<compile_context>
chip_gen: v5e
topology: v5e:2x2
jax: 0.10.0
libtpu: 0.0.40
codegen_flags: <defaults>
</compile_context>

<pallas_src>
import jax
import jax.numpy as jnp
from jax import lax
from jax.experimental import pallas as pl
from jax.experimental.pallas import tpu as pltpu

KH, KW = 3, 3  # 3x3 "SAME" conv, pad=1


# ----------------------------- Pallas kernel ------------------------------ #
def conv3x3_bias_relu_kernel(x_ref, w_ref, b_ref, o_ref):
    """Fused (im2col'd conv matmul + bias + ReLU) for one tile of output rows.

    x_ref : [TM, Ktot]   dy-folded, zero-padded activation rows (bf16)
    w_ref : [Ktot, WCo]  stacked banded conv weights (bf16), VMEM-resident
    b_ref : [1, WCo]     bias tiled across W (f32), VMEM-resident
    o_ref : [TM, WCo]    lane-dense output rows
    """
    acc = jnp.dot(x_ref[...], w_ref[...], preferred_element_type=jnp.float32)
    # Epilogue strictly in f32 (v5e VPU has no bf16); full-lane unmasked store.
    o_ref[...] = jnp.maximum(acc + b_ref[...], 0.0).astype(o_ref.dtype)


# --------------------------- weight/bias folding --------------------------- #
def fold_conv_weight_stacked(w_conv, W, dtype):
    """[Cout, Cin, KH, KW] (OIHW) -> [KH*(W+KW-1)*Cin, W*Cout] stacked band.

    M[dy*Kpad + (w+dx)*Cin + c, w*Cout + co] = w_conv[co, c, dy, dx], so the
    SAME 3x3 conv becomes a single matmul against the dy-folded input:
        out[row, :] = x_dy[row, :] @ M
    Size is O(KH * W^2 * Cin * Cout): ~55 KB bf16 here; for large W tile the
    output width in 128-lane chunks so the band stays small and VMEM-resident
    (matters most on v7x's 64 MiB VMEM).
    """
    Cout, Cin, kh, kw = w_conv.shape
    Kpad = (W + kw - 1) * Cin
    w_hwio = jnp.transpose(w_conv, (2, 3, 1, 0))          # [KH, KW, Cin, Cout]
    blk = w_hwio.reshape(kh, kw * Cin, Cout)              # [dy, dx*Cin + c, co]
    M = jnp.zeros((kh, Kpad, W * Cout), jnp.float32)
    for w in range(W):                                    # trace-time, W small
        M = M.at[:, w * Cin:(w + kw) * Cin, w * Cout:(w + 1) * Cout].set(blk)
    return M.reshape(kh * Kpad, W * Cout).astype(dtype)


def _pick_row_tile(total_rows, target):
    """Largest multiple-of-8 divisor of total_rows that is <= target."""
    best = None
    for t in range(8, min(total_rows, target) + 1, 8):
        if total_rows % t == 0:
            best = t
    return best if best is not None else total_rows


# ------------------------------- forward ----------------------------------- #
def network_forward(x_nchw, w_conv, b_conv, *, compute_dtype=jnp.bfloat16,
                    out_dtype=jnp.float32, row_tile_target=256):
    """Equivalent of Network.forward(x) = net(x), net = Conv2d(3x3, pad=1)+ReLU."""
    N, Cin, H, W = x_nchw.shape
    Cout = w_conv.shape[0]
    WCo = W * Cout                        # output lane width (16*8 = 128 here)
    Kpad = (W + KW - 1) * Cin             # lanes per padded image row
    Ktot = KH * Kpad                      # fused contraction depth (3*72 = 216)
    total_rows = N * H                    # all output rows, batched over images

    # TODO(synk): for shapes where W*Cout is not a multiple of 128, tile the
    # output width into 128-lane chunks (pad the tail tile) so stores never
    # fall back to masked vst.msk.
    assert WCo % 128 == 0, "demo shapes keep the output lane-dense (mult of 128)"

    # --- input prep: NCHW -> NHWC, SAME pad, (W,C)->lanes, dy-fold, bf16 ---
    x_nhwc = jnp.transpose(x_nchw, (0, 2, 3, 1))                 # [N, H, W, Cin]
    xpad = jnp.pad(x_nhwc, ((0, 0), (1, 1), (1, 1), (0, 0)))     # [N, H+2, W+2, Cin]
    xpad2d = xpad.reshape(N, H + 2, Kpad).astype(compute_dtype)  # [N, H+2, Kpad]
    # dy-fold: row h carries padded rows h, h+1, h+2 concatenated along lanes,
    # so the kernel does ONE K=Ktot matmul instead of three shifted K=Kpad dots.
    x_dy = jnp.concatenate([xpad2d[:, dy:dy + H, :] for dy in range(KH)],
                           axis=-1)                              # [N, H, Ktot]
    x_rows = x_dy.reshape(total_rows, Ktot)                      # [N*H, Ktot]

    m_w = fold_conv_weight_stacked(w_conv, W, compute_dtype)     # [Ktot, WCo]
    bias_row = jnp.tile(b_conv.astype(jnp.float32), W).reshape(1, WCo)

    # Row tile: target >=256 rows per matmul (v6e/v7x MXU M fill, amortizes the
    # ~0.35 us/step overhead); at the demo size (32 rows) it is one grid step.
    # v7x note: when total_rows is large, this still keeps >= 4 grid steps so
    # 'parallel' actually splits work across its two TensorCores.
    tm = _pick_row_tile(total_rows, row_tile_target)
    grid = (total_rows // tm,)

    # VMEM per step ~ 2*tm*Ktot*2B (dbl-buffered rows) + Ktot*WCo*2B (resident
    # weights) + WCo*4B + 2*tm*WCo*out_bytes — a few hundred KB at tm=256,
    # far under the 32 MiB scoped default on v5e/v6e/v7x.
    cost = pl.CostEstimate(
        flops=2 * total_rows * Ktot * WCo,
        transcendentals=0,
        bytes_accessed=int(total_rows * Ktot * 2 + Ktot * WCo * 2 + WCo * 4
                           + total_rows * WCo * jnp.dtype(out_dtype).itemsize))

    out_flat = pl.pallas_call(
        conv3x3_bias_relu_kernel,
        out_shape=jax.ShapeDtypeStruct((total_rows, WCo), out_dtype),
        grid=grid,
        in_specs=[
            pl.BlockSpec((tm, Ktot), lambda i: (i, 0)),      # streamed rows
            pl.BlockSpec((Ktot, WCo), lambda i: (0, 0)),     # resident weights
            pl.BlockSpec((1, WCo), lambda i: (0, 0)),        # resident bias
        ],
        out_specs=pl.BlockSpec((tm, WCo), lambda i: (i, 0)),  # 128-lane rows
        compiler_params=pltpu.CompilerParams(
            dimension_semantics=("parallel",)),
        cost_estimate=cost,
    )(x_rows, m_w, bias_row)

    out_nhwc = out_flat.reshape(N, H, W, Cout)
    # One boundary transpose back to NCHW to preserve PyTorch semantics.
    return jnp.transpose(out_nhwc, (0, 3, 1, 2)).astype(jnp.float32)


# ------------------------------ reference ---------------------------------- #
def reference_forward(x_nchw, w_conv, b_conv):
    out = lax.conv_general_dilated(
        x_nchw, w_conv, window_strides=(1, 1), padding="SAME",
        dimension_numbers=("NCHW", "OIHW", "NCHW"),
        precision=lax.Precision.HIGHEST)
    out = out + b_conv.reshape(1, -1, 1, 1)
    return jnp.maximum(out, 0.0)


if __name__ == "__main__":
    key = jax.random.PRNGKey(0)
    kx, kw, kb = jax.random.split(key, 3)

    N, Cin, H, W = 2, 4, 16, 16
    Cout = 8

    x = jax.random.normal(kx, (N, Cin, H, W), dtype=jnp.float32)
    w_conv = jax.random.normal(kw, (Cout, Cin, 3, 3), dtype=jnp.float32) * 0.1
    b_conv = jax.random.normal(kb, (Cout,), dtype=jnp.float32) * 0.1

    out = jax.block_until_ready(network_forward(x, w_conv, b_conv))
    ref = jax.block_until_ready(reference_forward(x, w_conv, b_conv))

    assert out.shape == (N, Cout, H, W)
    # bf16 MXU operands with f32 accumulation -> loosened tolerance vs f32 ref.
    assert jnp.allclose(out, ref, atol=3e-2, rtol=3e-2)

    # TODO(synk): `seg` member of Network is unused in forward(); nothing to port.
    print("KERNEL_OK")
</pallas_src>

<mosaic_0001>
module attributes {stable_mosaic.version = 11 : i64} {
  func.func @conv3x3_bias_relu_kernel(%arg0: i32, %arg1: memref<32x216xbf16, #tpu.memory_space<vmem>>, %arg2: memref<216x128xbf16, #tpu.memory_space<vmem>>, %arg3: memref<1x128xf32, #tpu.memory_space<vmem>>, %arg4: memref<32x128xf32, #tpu.memory_space<vmem>>) attributes {dimension_semantics = [#tpu.dimension_semantics<parallel>], iteration_bounds = array<i64: 1>, scalar_prefetch = 0 : i64, scratch_operands = 0 : i64, tpu.core_type = #tpu.core_type<tc>, window_params = [{transform_indices = @transform_0, window_bounds = array<i64: 32, 216>}, {pipeline_mode = #tpu.pipeline_mode<synchronous>, transform_indices = @transform_1, window_bounds = array<i64: 216, 128>}, {pipeline_mode = #tpu.pipeline_mode<synchronous>, transform_indices = @transform_2, window_bounds = array<i64: 1, 128>}, {transform_indices = @transform_3, window_bounds = array<i64: 32, 128>}]} {
    %c0 = arith.constant 0 : index
    %c0_0 = arith.constant 0 : index
    %0 = vector.load %arg1[%c0, %c0_0] : memref<32x216xbf16, #tpu.memory_space<vmem>>, vector<32x216xbf16>
    %c0_1 = arith.constant 0 : index
    %c0_2 = arith.constant 0 : index
    %1 = vector.load %arg2[%c0_1, %c0_2] : memref<216x128xbf16, #tpu.memory_space<vmem>>, vector<216x128xbf16>
    %cst = arith.constant dense<0.000000e+00> : vector<32x128xf32>
    %2 = tpu.matmul %0, %1, %cst {dimension_numbers = #tpu.dot_dimension_numbers<[1], [0], [0], [1], [0, 0, 1, 1], [], []>} : vector<32x216xbf16>, vector<216x128xbf16>, vector<32x128xf32> -> vector<32x128xf32>
    %c0_3 = arith.constant 0 : index
    %c0_4 = arith.constant 0 : index
    %3 = vector.load %arg3[%c0_3, %c0_4] : memref<1x128xf32, #tpu.memory_space<vmem>>, vector<1x128xf32>
    %4 = vector.broadcast %3 : vector<1x128xf32> to vector<32x128xf32>
    %5 = arith.addf %2, %4 : vector<32x128xf32>
    %cst_5 = arith.constant 0.000000e+00 : f32
    %6 = vector.broadcast %cst_5 : f32 to vector<32x128xf32>
    %7 = arith.maximumf %5, %6 : vector<32x128xf32>
    %c0_6 = arith.constant 0 : index
    %c0_7 = arith.constant 0 : index
    %8 = vector.load %arg4[%c0_6, %c0_7] : memref<32x128xf32, #tpu.memory_space<vmem>>, vector<32x128xf32>
    tpu.vector_store %arg4[%c0_6, %c0_7], %7 {strides = array<i32>} : memref<32x128xf32, #tpu.memory_space<vmem>>, vector<32x128xf32>,
    return
  }
  func.func @transform_0(%arg0: i32) -> (i32, i32) {
    %c0_i32 = arith.constant 0 : i32
    %c0_i32_0 = arith.constant 0 : i32
    return %arg0, %c0_i32 : i32, i32
  }
  func.func @transform_1(%arg0: i32) -> (i32, i32) {
    %c0_i32 = arith.constant 0 : i32
    %c0_i32_0 = arith.constant 0 : i32
    %c0_i32_1 = arith.constant 0 : i32
    return %c0_i32, %c0_i32_0 : i32, i32
  }
  func.func @transform_2(%arg0: i32) -> (i32, i32) {
    %c0_i32 = arith.constant 0 : i32
    %c0_i32_0 = arith.constant 0 : i32
    %c0_i32_1 = arith.constant 0 : i32
    return %c0_i32, %c0_i32_0 : i32, i32
  }
  func.func @transform_3(%arg0: i32) -> (i32, i32) {
    %c0_i32 = arith.constant 0 : i32
    %c0_i32_0 = arith.constant 0 : i32
    return %arg0, %c0_i32 : i32, i32
  }
}

</mosaic_0001>

<llo_original>
// kernel: tpu_custom_call.1
$region0: #{tpu_custom_call.1}
  #allocation0 [shape = 'u32[]', space=smem, size = 0x4, offset = 0x4, fixed_abs, tag = 'smem constant byte address 0x4 - core index']
  #allocation1 [shape = 'u32[72,128]{1,0:T(1,128)}', space=vmem, size = 0x9000, scoped, tag = 'internal scratch']
  %s0 = inlined_call_operand.hbm [shape: bf16[32,216], index: 0, kind: input, shape index: {}]
  %s1 = inlined_call_operand.hbm [shape: bf16[216,128], index: 1, kind: input, shape index: {}]
  %s2 = inlined_call_operand.vmem [shape: f32[1,128], index: 2, kind: input, shape index: {}]
  %s3 = inlined_call_operand.hbm [shape: f32[32,128], index: 3, kind: output, shape index: {}]
  %s4 = sld [smem:[#allocation0]]
  $region30: #{tpu_custom_call.1} parent=0
    _
  %s6 = ssub.s32 1, %s4
  %s7 = scalar_select 0, %s6, %s4
  $region1: #{tpu_custom_call.1} parent=0
    #allocation2 [shape = 'u8[16384]{0}', space=vmem, size = 0x4000, scoped, tag = 'input window, operand 0, single buffered']
    #allocation3 [shape = 's32[1]{0}', space=sflag, size = 0x4, scoped, tag = 'scoped memory for tpu_custom_call.1']
    #allocation4 [shape = 's32[1]{0}', space=sflag, size = 0x4, scoped, tag = 'scoped memory for tpu_custom_call.1']
    #allocation5 [shape = 'u8[55296]{0}', space=vmem, size = 0xd800, scoped, tag = 'input window, operand 1, single buffered']
    #allocation6 [shape = 's32[1]{0}', space=sflag, size = 0x4, scoped, tag = 'scoped memory for tpu_custom_call.1']
    #allocation7 [shape = 'u8[16384]{0}', space=vmem, size = 0x4000, scoped, tag = 'output window, operand 0, single buffered']
    %8 = vsyncpa [#allocation3], 0
    %9 = vsyncpa [#allocation6], 0
    %10 = vsyncpa [#allocation4], 0
    // Predicated region
    $region2: #{tpu_custom_call.1} parent=1 // pred_check
      _
    $region3: #{tpu_custom_call.1} parent=1 // pred_check_branch
      %12 = sbr.rel (0) target = $region5
    $region4: #{tpu_custom_call.1} parent=1 // pred_region
      %14 = vsyncadd [#allocation3], 0
      %s15 = sshll.u32 %s0, 4
      %s16 = int_to_ptr.hbm [resolvable:$true] %s15
      %s17 = sshll.u32 [#allocation2], 4
      %s18 = int_to_ptr.vmem [resolvable:$true] %s17
      %23 = dma.hbm_to_vmem [thread:$0]  %s16, 512, %s18, [#allocation3], 128, 128, 8
    $region5: #{tpu_custom_call.1} parent=1 // pred_fallthru
      _
    // Predicated region
    $region6: #{tpu_custom_call.1} parent=1 // pred_check
      _
    $region7: #{tpu_custom_call.1} parent=1 // pred_check_branch
      %25 = sbr.rel (0) target = $region9
    $region8: #{tpu_custom_call.1} parent=1 // pred_region
      %27 = vsyncadd [#allocation6], 0
      %s28 = sshll.u32 %s1, 4
      %s29 = int_to_ptr.hbm [resolvable:$true] %s28
      %s30 = sshll.u32 [#allocation5], 4
      %s31 = int_to_ptr.vmem [resolvable:$true] %s30
      %36 = dma.hbm_to_vmem [thread:$0]  %s29, 1728, %s31, [#allocation6], 64, 64, 4
    $region9: #{tpu_custom_call.1} parent=1 // pred_fallthru
      _
    // Predicated region
    $region10: #{tpu_custom_call.1} parent=1 // pred_check
      _
    $region11: #{tpu_custom_call.1} parent=1 // pred_check_branch
      %38 = sbr.rel (0) target = $region13
    $region12: #{tpu_custom_call.1} parent=1 // pred_region
      _
    $region13: #{tpu_custom_call.1} parent=1 // pred_fallthru
      _
    // Predicated region
    $region14: #{tpu_custom_call.1} parent=1 // pred_check
      _
    $region15: #{tpu_custom_call.1} parent=1 // pred_check_branch
      %40 = sbr.rel (0) target = $region17
    $region16: #{tpu_custom_call.1} parent=1 // pred_region
      %42 = dma.done [#allocation3], 512
    $region17: #{tpu_custom_call.1} parent=1 // pred_fallthru
      _
    // Predicated region
    $region18: #{tpu_custom_call.1} parent=1 // pred_check
      _
    $region19: #{tpu_custom_call.1} parent=1 // pred_check_branch
      %44 = sbr.rel (0) target = $region21
    $region20: #{tpu_custom_call.1} parent=1 // pred_region
      %46 = dma.done [#allocation6], 1728
    $region21: #{tpu_custom_call.1} parent=1 // pred_fallthru
      _
    %v48 = vld [vmem:[#allocation2] sm:$0xff]
    %v49 = vld [vmem:[#allocation2 + $0x8] sm:$0xff]
    %v50 = vld [vmem:[#allocation2 + $0x10] sm:$0xff]
    %v51 = vld [vmem:[#allocation2 + $0x18] sm:$0xff]
    %v52 = vld [vmem:[#allocation5] sm:$0xf]
    %v53 = vld [vmem:[#allocation5 + $0x4] sm:$0xf]
    %v54 = vld [vmem:[#allocation5 + $0x8] sm:$0xf]
    %v55 = vld [vmem:[#allocation5 + $0xc] sm:$0xf]
    %v56 = vld [vmem:[#allocation5 + $0x10] sm:$0xf]
    %v57 = vld [vmem:[#allocation5 + $0x14] sm:$0xf]
    %v58 = vld [vmem:[#allocation5 + $0x18] sm:$0xf]
    %v59 = vld [vmem:[#allocation5 + $0x1c] sm:$0xf]
    %v60 = vld [vmem:[#allocation5 + $0x20] sm:$0xf]
    %v61 = vld [vmem:[#allocation5 + $0x24] sm:$0xf]
    %v62 = vld [vmem:[#allocation5 + $0x28] sm:$0xf]
    %v63 = vld [vmem:[#allocation5 + $0x2c] sm:$0xf]
    %v64 = vld [vmem:[#allocation5 + $0x30] sm:$0xf]
    %v65 = vld [vmem:[#allocation5 + $0x34] sm:$0xf]
    %v66 = vld [vmem:[#allocation5 + $0x38] sm:$0xf]
    %v67 = vld [vmem:[#allocation5 + $0x3c] sm:$0xf]
    %v68 = vld [vmem:[#allocation5 + $0x40] sm:$0xf]
    %v69 = vld [vmem:[#allocation5 + $0x44] sm:$0xf]
    %v70 = vld [vmem:[#allocation5 + $0x48] sm:$0xf]
    %v71 = vld [vmem:[#allocation5 + $0x4c] sm:$0xf]
    %v72 = vld [vmem:[#allocation5 + $0x50] sm:$0xf]
    %v73 = vld [vmem:[#allocation5 + $0x54] sm:$0xf]
    %v74 = vld [vmem:[#allocation5 + $0x58] sm:$0xf]
    %v75 = vld [vmem:[#allocation5 + $0x5c] sm:$0xf]
    %v76 = vld [vmem:[#allocation5 + $0x60] sm:$0xf]
    %v77 = vld [vmem:[#allocation5 + $0x64] sm:$0xf]
    %v78 = vld [vmem:[#allocation5 + $0x68] sm:$0xf]
    %v79 = vld [vmem:[%s2] sm:$0x1]
    %v81 = vperm.slane %v79, 0
    %v87 = vunpack.c.l.b16 %v48
    %v88 = vunpack.c.h.b16 %v48
    %v89 = vunpack.c.l.b16 %v49
    %v90 = vunpack.c.h.b16 %v49
    %v91 = vunpack.c.l.b16 %v50
    %v92 = vunpack.c.h.b16 %v50
    %v93 = vunpack.c.l.b16 %v51
    %v94 = vunpack.c.h.b16 %v51
    %v95 = vpack.c.b16 %v89, %v87
    %v96 = vpack.c.b16 %v90, %v88
    %v97 = vpack.c.b16 %v93, %v91
    %v98 = vpack.c.b16 %v94, %v92
    %v128 = vunpack.c.l.b16 %v52
    %v129 = vunpack.c.l.b16 %v53
    %v130 = vunpack.c.l.b16 %v54
    %v131 = vunpack.c.l.b16 %v55
    %v132 = vunpack.c.l.b16 %v56
    %v133 = vunpack.c.l.b16 %v57
    %v134 = vunpack.c.l.b16 %v58
    %v135 = vunpack.c.l.b16 %v59
    %v136 = vunpack.c.l.b16 %v60
    %v137 = vunpack.c.l.b16 %v61
    %v138 = vunpack.c.l.b16 %v62
    %v139 = vunpack.c.l.b16 %v63
    %v140 = vunpack.c.l.b16 %v64
    %v141 = vunpack.c.l.b16 %v65
    %v142 = vunpack.c.l.b16 %v66
    %v143 = vunpack.c.l.b16 %v67
    %v144 = vunpack.c.l.b16 %v68
    %v145 = vunpack.c.l.b16 %v69
    %v146 = vunpack.c.l.b16 %v70
    %v147 = vunpack.c.l.b16 %v71
    %v148 = vunpack.c.l.b16 %v72
    %v149 = vunpack.c.l.b16 %v73
    %v150 = vunpack.c.l.b16 %v74
    %v151 = vunpack.c.l.b16 %v75
    %v152 = vunpack.c.l.b16 %v76
    %v153 = vunpack.c.l.b16 %v77
    %v154 = vunpack.c.l.b16 %v78
    %v155 = vpack.c.b16 %v129, %v128
    %v156 = vpack.c.b16 %v131, %v130
    %v157 = vpack.c.b16 %v133, %v132
    %v158 = vpack.c.b16 %v135, %v134
    %v159 = vpack.c.b16 %v137, %v136
    %v160 = vpack.c.b16 %v139, %v138
    %v161 = vpack.c.b16 %v141, %v140
    %v162 = vpack.c.b16 %v143, %v142
    %v163 = vpack.c.b16 %v145, %v144
    %v164 = vpack.c.b16 %v147, %v146
    %v165 = vpack.c.b16 %v149, %v148
    %v166 = vpack.c.b16 %v151, %v150
    %v167 = vpack.c.b16 %v153, %v152
    %v168 = vpack.c.b16 %v154, %v154
    %vm182 = vcmask 719872
    %v184 = vsel %vm182, %v96, 0
    %v187 = vsel %vm182, %v98, 0
    %vm189 = vcmask 1043456
    %v191 = vsel %vm189, %v168, 0
    %193 = vmatpush.bf16.msra.mxu0 %v162
    %194 = vmatpush.bf16.msra.mxu0 %v161
    %195 = vmatpush.bf16.msra.mxu0 %v160
    %196 = vmatpush.bf16.msra.mxu0 %v159
    %197 = vmatpush.bf16.msra.mxu0 %v158
    %198 = vmatpush.bf16.msra.mxu0 %v157
    %199 = vmatpush.bf16.msra.mxu0 %v156
    %200 = vmatpush.bf16.msra.mxu0 %v155
    %201 = vmatmul.bf16.gmra.mxu0 %v95
    %v202 = vpop.f32.mrf.mxu0
    %v203 = vadd.f32 %v81, %v202
    %v204 = vpop.f32.mrf.mxu0
    %v205 = vadd.f32 %v81, %v204
    %206 = vmatmul.bf16.gmra.mxu0 %v97
    %v207 = vpop.f32.mrf.mxu0
    %v208 = vadd.f32 %v81, %v207
    %v209 = vpop.f32.mrf.mxu0
    %v210 = vadd.f32 %v81, %v209
    %211 = vdwg.mxu0
    %212 = vmatpush.bf16.msra.mxu0 0
    %213 = vmatpush.bf16.msra.mxu0 0
    %214 = vmatpush.bf16.msra.mxu0 %v191
    %215 = vmatpush.bf16.msra.mxu0 %v167
    %216 = vmatpush.bf16.msra.mxu0 %v166
    %217 = vmatpush.bf16.msra.mxu0 %v165
    %218 = vmatpush.bf16.msra.mxu0 %v164
    %219 = vmatpush.bf16.msra.mxu0 %v163
    %220 = vmatmul.bf16.gmra.mxu0 %v184
    %v221 = vpop.f32.mrf.mxu0
    %v222 = vadd.f32 %v203, %v221
    %v223 = vpop.f32.mrf.mxu0
    %v224 = vadd.f32 %v205, %v223
    %225 = vmatmul.bf16.gmra.mxu0 %v187
    %v226 = vpop.f32.mrf.mxu0
    %v227 = vadd.f32 %v208, %v226
    %v228 = vpop.f32.mrf.mxu0
    %v229 = vadd.f32 %v210, %v228
    %230 = vdwg.mxu0
    %v231 = vmax.f32 %v222, 0.0
    %v232 = vmax.f32 %v224, 0.0
    %v233 = vmax.f32 %v227, 0.0
    %v234 = vmax.f32 %v229, 0.0
    %235 = vst [vmem:[#allocation7] sm:$0xff] %v231
    %236 = vst [vmem:[#allocation7 + $0x8] sm:$0xff] %v232
    %237 = vst [vmem:[#allocation7 + $0x10] sm:$0xff] %v233
    %238 = vst [vmem:[#allocation7 + $0x18] sm:$0xff] %v234
    // Predicated region
    $region22: #{tpu_custom_call.1} parent=1 // pred_check
      _
    $region23: #{tpu_custom_call.1} parent=1 // pred_check_branch
      %240 = sbr.rel (0) target = $region25
    $region24: #{tpu_custom_call.1} parent=1 // pred_region
      %242 = vsyncadd [#allocation4], 0
      %s243 = sshll.u32 [#allocation7], 4
      %s244 = int_to_ptr.vmem [resolvable:$true] %s243
      %s245 = sshll.u32 %s3, 4
      %s246 = int_to_ptr.hbm [resolvable:$true] %s245
      %251 = dma.vmem_to_hbm [thread:$0]  %s244, 512, %s246, [#allocation4], 128, 128, 8
    $region25: #{tpu_custom_call.1} parent=1 // pred_fallthru
      _
    // Predicated region
    $region26: #{tpu_custom_call.1} parent=1 // pred_check
      _
    $region27: #{tpu_custom_call.1} parent=1 // pred_check_branch
      %253 = sbr.rel (0) target = $region29
    $region28: #{tpu_custom_call.1} parent=1 // pred_region
      %255 = dma.done [#allocation4], 512
    $region29: #{tpu_custom_call.1} parent=1 // pred_fallthru
      _
    %256 = vsyncpa [#allocation3], 1
    %257 = vsyncpa [#allocation6], 1
    %258 = vsyncpa [#allocation4], 1

</llo_original>
